<compile_context>
chip_gen: v7x
topology: tpu7x:2x2x1
jax: 0.10.0
libtpu: 0.0.40
codegen_flags: <defaults>
</compile_context>

<pallas_src>
import jax
import jax.numpy as jnp
from jax.experimental import pallas as pl
from jax.experimental.pallas import tpu as pltpu

LANE = 128
_TARGET_BLOCK_BYTES = 2 * 1024 * 1024   # per pipeline buffer (double-buffered)
_PALLAS_MIN_ELEMS = 1024                # below this a plain XLA reduce is faster
_VMEM_LIMIT_BYTES = 32 * 1024 * 1024    # safe on v5e/v6e/v7x, ample headroom


def _round_up(x: int, m: int) -> int:
    return -(-x // m) * m


def _make_partial_sum_kernel(rows_total: int, block_rows: int):
    """Per-tile partial sum: (block_rows, 128) tile -> (1, 128) f32 partial."""

    def kernel(x_ref, o_ref):
        i = pl.program_id(0)
        last = pl.num_programs(0) - 1
        # Cast in VMEM: the HBM stream keeps the caller's dtype (bf16 stays bf16).
        x = x_ref[...].astype(jnp.float32)

        @pl.when(i < last)
        def _():
            # Hot path: full tile, sublane fold + store of a lane-dense partial.
            o_ref[...] = jnp.sum(x, axis=0, keepdims=True)

        @pl.when(i == last)
        def _():
            # Last grid block may be partial (rows beyond the array are
            # unspecified block padding) -> zero them before the fold.
            rows_left = rows_total - i * block_rows
            row_ids = jax.lax.broadcasted_iota(jnp.int32, x.shape, 0)
            xm = jnp.where(row_ids < rows_left, x, jnp.float32(0.0))
            o_ref[...] = jnp.sum(xm, axis=0, keepdims=True)

    return kernel


def loss_score_pallas(loss, targets=None, *, block_bytes=_TARGET_BLOCK_BYTES):
    """Pallas implementation of LossScore.forward: returns -mean(loss).

    loss: any-shaped float array (per-sample / per-token losses or a scalar).
    targets: ignored (the original forward never reads it).
    Returns a scalar float32 equal to -mean(loss).
    """
    del targets  # unused by LossScore.forward
    loss = jnp.asarray(loss)
    if not jnp.issubdtype(loss.dtype, jnp.floating):
        loss = loss.astype(jnp.float32)
    flat = loss.reshape(-1)
    n = flat.shape[0]
    assert n > 0, "mean of an empty loss tensor is undefined"

    # Fast path: per-batch losses of a handful of elements are the common case;
    # the fixed pallas_call launch cost dwarfs the work there.
    if n < _PALLAS_MIN_ELEMS:
        return -jnp.mean(flat.astype(jnp.float32))

    itemsize = flat.dtype.itemsize
    sublane_mult = 8 * max(1, 4 // itemsize)  # 8 (f32), 16 (bf16), 32 (8-bit)

    rows_total = pl.cdiv(n, LANE)
    # Only the sub-128 remainder is ever padded (tiny, sum-neutral); full-tile
    # raggedness is handled by in-kernel masking instead of a padded HBM copy.
    rem = n % LANE
    if rem:
        flat = jnp.pad(flat, (0, LANE - rem))
    x2d = flat.reshape(rows_total, LANE)

    # Tile sized in bytes, rounded to the sublane multiple for the dtype.
    block_rows_target = max(
        sublane_mult,
        (block_bytes // (LANE * itemsize)) // sublane_mult * sublane_mult,
    )
    if rows_total <= block_rows_target:
        # Single tile: use the full row extent (full-dim block, no divisibility
        # constraint, no out-of-bounds block padding).
        block_rows = rows_total
    else:
        block_rows = block_rows_target
    grid = pl.cdiv(rows_total, block_rows)

    partials = pl.pallas_call(
        _make_partial_sum_kernel(rows_total, block_rows),
        out_shape=jax.ShapeDtypeStruct((grid, LANE), jnp.float32),
        grid=(grid,),
        in_specs=[pl.BlockSpec((block_rows, LANE), lambda i: (i, 0))],
        out_specs=pl.BlockSpec((1, LANE), lambda i: (i, 0)),
        compiler_params=pltpu.CompilerParams(
            dimension_semantics=("parallel",),
            vmem_limit_bytes=_VMEM_LIMIT_BYTES,
        ),
    )(x2d)

    # Tiny final reduce in the wrapper (grid x 128 f32 elements).
    return -(jnp.sum(partials) * (1.0 / float(n)))


def _loss_score_ref(loss):
    """Pure-JAX reference mirroring LossScore.forward (-mean(loss))."""
    return -jnp.mean(jnp.asarray(loss).astype(jnp.float32))


if __name__ == "__main__":
    key = jax.random.PRNGKey(0)
    k1, k2, k3, k4 = jax.random.split(key, 4)

    # 1) Tiny per-batch loss (typical LossScore usage) -> XLA fast path.
    loss_small = jax.random.uniform(k1, (2, 8), dtype=jnp.float32)
    s = jax.block_until_ready(loss_score_pallas(loss_small))
    assert jnp.allclose(s, _loss_score_ref(loss_small), rtol=1e-6, atol=1e-6), (
        s, _loss_score_ref(loss_small))

    # 2) f32 per-token loss, multiple-of-128 count -> Pallas path, no padding,
    #    single full-dim tile.
    loss_f32 = jax.random.uniform(k2, (16, 128), dtype=jnp.float32)  # 2048 elems
    s = jax.block_until_ready(loss_score_pallas(loss_f32))
    assert jnp.allclose(s, _loss_score_ref(loss_f32), rtol=1e-5, atol=1e-5), (
        s, _loss_score_ref(loss_f32))

    # 3) Ragged f32 loss with a small block size -> multi-tile parallel partials,
    #    sub-128 remainder pad, last-block row masking.
    loss_ragged = jax.random.uniform(k3, (520, 130), dtype=jnp.float32)  # 67600 elems
    s = jax.block_until_ready(loss_score_pallas(loss_ragged, block_bytes=64 * 1024))
    assert jnp.allclose(s, _loss_score_ref(loss_ragged), rtol=1e-5, atol=1e-5), (
        s, _loss_score_ref(loss_ragged))

    # 4) bf16 loss: HBM stream stays bf16, f32 cast happens in-kernel.
    loss_bf16 = jax.random.uniform(k4, (64, 192), dtype=jnp.float32).astype(jnp.bfloat16)
    s = jax.block_until_ready(loss_score_pallas(loss_bf16))
    assert jnp.allclose(s, _loss_score_ref(loss_bf16), rtol=1e-3, atol=1e-3), (
        s, _loss_score_ref(loss_bf16))

    print("KERNEL_OK")
</pallas_src>

<mosaic_0001>
module attributes {stable_mosaic.version = 11 : i64} {
  func.func @kernel(%arg0: i32, %arg1: memref<16x128xf32, #tpu.memory_space<vmem>>, %arg2: memref<1x128xf32, #tpu.memory_space<vmem>>) attributes {dimension_semantics = [#tpu.dimension_semantics<parallel>], iteration_bounds = array<i64: 1>, scalar_prefetch = 0 : i64, scratch_operands = 0 : i64, tpu.core_type = #tpu.core_type<tc>, window_params = [{transform_indices = @transform_0, window_bounds = array<i64: 16, 128>}, {transform_indices = @transform_1, window_bounds = array<i64: 1, 128>}]} {
    %c0 = arith.constant 0 : index
    %c0_0 = arith.constant 0 : index
    %0 = vector.load %arg1[%c0, %c0_0] : memref<16x128xf32, #tpu.memory_space<vmem>>, vector<16x128xf32>
    %c0_i32 = arith.constant 0 : i32
    %1 = arith.cmpi slt, %arg0, %c0_i32 : i32
    %2 = arith.extui %1 : i1 to i32
    %c0_i32_1 = arith.constant 0 : i32
    %3 = arith.cmpi ne, %2, %c0_i32_1 : i32
    scf.if %3 {
      %cst = arith.constant dense<0.000000e+00> : vector<128xf32>
      %7 = vector.multi_reduction <add>, %0, %cst [0] : vector<16x128xf32> to vector<128xf32>
      %8 = vector.shape_cast %7 : vector<128xf32> to vector<1x128xf32>
      %c0_4 = arith.constant 0 : index
      %c0_5 = arith.constant 0 : index
      %9 = vector.load %arg2[%c0_4, %c0_5] : memref<1x128xf32, #tpu.memory_space<vmem>>, vector<1x128xf32>
      tpu.vector_store %arg2[%c0_4, %c0_5], %8 {strides = array<i32>} : memref<1x128xf32, #tpu.memory_space<vmem>>, vector<1x128xf32>,
    } else {
    }
    %c0_i32_2 = arith.constant 0 : i32
    %4 = arith.cmpi eq, %arg0, %c0_i32_2 : i32
    %5 = arith.extui %4 : i1 to i32
    %c0_i32_3 = arith.constant 0 : i32
    %6 = arith.cmpi ne, %5, %c0_i32_3 : i32
    scf.if %6 {
      %c16_i32 = arith.constant 16 : i32
      %7 = arith.muli %arg0, %c16_i32 : i32
      %c16_i32_4 = arith.constant 16 : i32
      %8 = arith.subi %c16_i32_4, %7 : i32
      %9 = tpu.iota {dimensions = array<i32: 0>} : vector<16x128xi32>
      %10 = vector.broadcast %8 : i32 to vector<16x128xi32>
      %11 = arith.cmpi slt, %9, %10 : vector<16x128xi32>
      %cst = arith.constant 0.000000e+00 : f32
      %12 = vector.broadcast %cst : f32 to vector<16x128xf32>
      %13 = arith.select %11, %0, %12 : vector<16x128xi1>, vector<16x128xf32>
      %cst_5 = arith.constant dense<0.000000e+00> : vector<128xf32>
      %14 = vector.multi_reduction <add>, %13, %cst_5 [0] : vector<16x128xf32> to vector<128xf32>
      %15 = vector.shape_cast %14 : vector<128xf32> to vector<1x128xf32>
      %c0_6 = arith.constant 0 : index
      %c0_7 = arith.constant 0 : index
      %16 = vector.load %arg2[%c0_6, %c0_7] : memref<1x128xf32, #tpu.memory_space<vmem>>, vector<1x128xf32>
      tpu.vector_store %arg2[%c0_6, %c0_7], %15 {strides = array<i32>} : memref<1x128xf32, #tpu.memory_space<vmem>>, vector<1x128xf32>,
    } else {
    }
    return
  }
  func.func @transform_0(%arg0: i32) -> (i32, i32) {
    %c0_i32 = arith.constant 0 : i32
    %c0_i32_0 = arith.constant 0 : i32
    return %arg0, %c0_i32 : i32, i32
  }
  func.func @transform_1(%arg0: i32) -> (i32, i32) {
    %c0_i32 = arith.constant 0 : i32
    %c0_i32_0 = arith.constant 0 : i32
    return %arg0, %c0_i32 : i32, i32
  }
}

</mosaic_0001>

<llo_original>
// kernel: tpu_custom_call.1
$region0: #{tpu_custom_call.1}
  #allocation0 [shape = 'u32[]', space=smem, size = 0x4, offset = 0x4, fixed_abs, tag = 'smem constant byte address 0x4 - core index']
  #allocation1 [shape = 'u32[144,128]{1,0:T(1,128)}', space=vmem, size = 0x12000, scoped, tag = 'internal scratch']
  %s0 = inlined_call_operand.hbm [shape: f32[16,128], index: 0, kind: input, shape index: {}]
  %s1 = inlined_call_operand.hbm [shape: f32[1,128], index: 1, kind: output, shape index: {}]
  %s2 = sld [smem:[#allocation0]]
  $region26: #{tpu_custom_call.1} parent=0
    _
  %s4 = ssub.s32 1, %s2
  %s5 = scalar_select 0, %s4, %s2
  $region1: #{tpu_custom_call.1} parent=0
    #allocation2 [shape = 'u8[8192]{0}', space=vmem, size = 0x2000, scoped, tag = 'input window, operand 0, single buffered']
    #allocation3 [shape = 's32[1]{0}', space=sflag, size = 0x4, scoped, tag = 'scoped memory for tpu_custom_call.1']
    #allocation4 [shape = 's32[1]{0}', space=sflag, size = 0x4, scoped, tag = 'scoped memory for tpu_custom_call.1']
    #allocation5 [shape = 'u8[512]{0}', space=vmem, size = 0x400, scoped, tag = 'output window, operand 0, single buffered']
    %6 = vsyncpa [#allocation3], 0
    %7 = vsyncpa [#allocation4], 0
    // Predicated region
    $region2: #{tpu_custom_call.1} parent=1 // pred_check
      _
    $region3: #{tpu_custom_call.1} parent=1 // pred_check_branch
      %9 = sbr.rel (0) target = $region5
    $region4: #{tpu_custom_call.1} parent=1 // pred_region
      %s11 = ssub.s32 256, 256
      %12 = vsyncadd [#allocation3], %s11
      %s13 = sshll.u32 [#allocation2], 4
      %s14 = int_to_ptr.vmem [resolvable:$true] %s13
      %19 = dma.hbm_to_vmem [thread:$0]  %s0, 256, %s14, [#allocation3], 128, 128, 8
    $region5: #{tpu_custom_call.1} parent=1 // pred_fallthru
      _
    // Predicated region
    $region6: #{tpu_custom_call.1} parent=1 // pred_check
      _
    $region7: #{tpu_custom_call.1} parent=1 // pred_check_branch
      %21 = sbr.rel (0) target = $region9
    $region8: #{tpu_custom_call.1} parent=1 // pred_region
      %22 = dma.done [#allocation3], 256
    $region9: #{tpu_custom_call.1} parent=1 // pred_fallthru
      _
    %v23 = vld [vmem:[#allocation2] sm:$0xff]
    %v24 = vld [vmem:[#allocation2 + $0x8] sm:$0xff]
    %p25 = scmp.lt.s32.totalorder 0, 0
    // Predicated region
    $region10: #{tpu_custom_call.1} parent=1 // pred_check
      %p26 = pneg %p25
    $region11: #{tpu_custom_call.1} parent=1 // pred_check_branch
      %28 = sbr.rel (%p26) target = $region13
    $region12: #{tpu_custom_call.1} parent=1 // pred_region
      %v29 = vadd.f32 %v23, %v24
      %v30 = vrot.slane %v29, 4
      %v31 = vadd.f32 %v29, %v30
      %v32 = vrot.slane %v31, 2
      %v33 = vadd.f32 %v31, %v32
      %v34 = vrot.slane %v33, 1
      %v35 = vadd.f32 %v33, %v34
      %36 = vst [vmem:[#allocation5] sm:$0x1] %v35
    $region13: #{tpu_custom_call.1} parent=1 // pred_fallthru
      _
    %p37 = scmp.eq.s32.totalorder 0, 0
    // Predicated region
    $region14: #{tpu_custom_call.1} parent=1 // pred_check
      %p38 = pneg %p37
    $region15: #{tpu_custom_call.1} parent=1 // pred_check_branch
      %40 = sbr.rel (%p38) target = $region17
    $region16: #{tpu_custom_call.1} parent=1 // pred_region
      %s41 = smul.u32 0, 16
      %s42 = ssub.s32 16, %s41
      %v43 = vlaneseq
      %v44 = vshrl.u32 %v43, 7
      %v45 = vadd.s32 %v44, 8
      %v46 = vstv %s42
      %vm47 = vcmp.lt.s32.totalorder %v44, %v46
      %vm48 = vcmp.lt.s32.totalorder %v45, %v46
      %v49 = vsel %vm47, %v23, 0.0
      %v50 = vsel %vm48, %v24, 0.0
      %v51 = vadd.f32 %v49, %v50
      %v52 = vrot.slane %v51, 4
      %v53 = vadd.f32 %v51, %v52
      %v54 = vrot.slane %v53, 2
      %v55 = vadd.f32 %v53, %v54
      %v56 = vrot.slane %v55, 1
      %v57 = vadd.f32 %v55, %v56
      %58 = vst [vmem:[#allocation5] sm:$0x1] %v57
    $region17: #{tpu_custom_call.1} parent=1 // pred_fallthru
      _
    // Predicated region
    $region18: #{tpu_custom_call.1} parent=1 // pred_check
      _
    $region19: #{tpu_custom_call.1} parent=1 // pred_check_branch
      %60 = sbr.rel (0) target = $region21
    $region20: #{tpu_custom_call.1} parent=1 // pred_region
      %s62 = ssub.s32 16, 16
      %63 = vsyncadd [#allocation4], %s62
      %s65 = sshll.u32 [#allocation5], 4
      %s66 = int_to_ptr.vmem [resolvable:$true] %s65
      %68 = dma.vmem_to_hbm [thread:$0]  %s66, 16, %s1, [#allocation4]
    $region21: #{tpu_custom_call.1} parent=1 // pred_fallthru
      _
    // Predicated region
    $region22: #{tpu_custom_call.1} parent=1 // pred_check
      _
    $region23: #{tpu_custom_call.1} parent=1 // pred_check_branch
      %70 = sbr.rel (0) target = $region25
    $region24: #{tpu_custom_call.1} parent=1 // pred_region
      %71 = dma.done [#allocation4], 16
    $region25: #{tpu_custom_call.1} parent=1 // pred_fallthru
      _
    %72 = vsyncpa [#allocation3], 1
    %73 = vsyncpa [#allocation4], 1

</llo_original>
